<compile_context>
chip_gen: v7x
topology: tpu7x:2x2x1
jax: 0.10.0
libtpu: 0.0.40
codegen_flags: <defaults>
</compile_context>

<pallas_src>
import jax
import jax.numpy as jnp
from jax.experimental import pallas as pl
from jax.experimental.pallas import tpu as pltpu

NOISE_STD = 0.1  # deterministic "noise aug" parameter


def _copypaste_kernel(cont_ref, mask_ref, bg_ref, noise_ref,
                      img_ref, mask_int_ref):
    # Block shapes (lane-dense: HW = Hb*Wb in the last dim):
    #   cont_ref : (Bt, C, HW) float32  (container, already padded + flipped)
    #   mask_ref : (Bt, 1, HW) float32  (mask, already padded + flipped)
    #   bg_ref   : (Bt, C, HW) float32
    #   noise_ref: (Bt, C, HW) float32
    #   img_ref  : (Bt, C, HW) float32  out
    #   mask_int_ref: (Bt, 1, HW) int32 out
    c = cont_ref[...]
    m = mask_ref[...]
    bg = bg_ref[...]

    # Copy-paste composite, strength-reduced (single mask broadcast over C):
    #   c*m + bg*(1-m) == bg + m*(c - bg)
    blended = bg + m * (c - bg)

    # Noise aug: additive Gaussian noise (tensor streamed in so the result is
    # bit-reproducible with the pre-drawn noise).
    img_ref[...] = (blended + NOISE_STD * noise_ref[...]).astype(img_ref.dtype)
    mask_int_ref[...] = (m >= 0.5).astype(jnp.int32)


def geometric_copypaste_noise(container, mask, background_image, num_steps, *,
                              noise):
    """container: (B,C,Hc,Wc), mask: (B,1,Hc,Wc), background: (B,C,Hb,Wb)."""
    del num_steps  # unused by the reference forward as well
    B, C, co_height, co_width = container.shape
    bg_height, bg_width = background_image.shape[-2:]

    height_pad, width_pad = bg_height - co_height, bg_width - co_width
    height_pad_half, width_pad_half = height_pad // 2, width_pad // 2
    # Reproduce F.pad argument order verbatim: pads W by `height_pad` amounts
    # and H by `width_pad` amounts (differences cancel for square backgrounds).
    pad4 = ((0, 0), (0, 0),
            (width_pad_half, width_pad - width_pad_half),
            (height_pad_half, height_pad - height_pad_half))

    # Geometric aug hoisted into the wrapper; XLA fuses pad + flip into the
    # producing copy, so the kernel is pure elementwise VPU/DMA work.
    aug_container = jnp.flip(jnp.pad(container, pad4), axis=-1)
    aug_mask = jnp.flip(jnp.pad(mask, pad4), axis=-1)

    # Lane-dense presentation: collapse (H, W) so the kernel's last dim is
    # HW (multiple of 128 at realistic sizes) rather than W.
    HW = bg_height * bg_width
    cont_l = aug_container.reshape(B, C, HW).astype(jnp.float32)
    mask_l = aug_mask.reshape(B, 1, HW).astype(jnp.float32)
    bg_l = background_image.reshape(B, C, HW).astype(jnp.float32)
    noise_l = noise.reshape(B, C, HW).astype(jnp.float32)

    # Fatten grid blocks: as many batch elements per step as fit under ~2 MiB
    # per input stream (6 streams x 2 buffers stays well inside v7x's 64 MiB
    # VMEM).  For the toy sizes below this collapses to a single grid step.
    per_batch_bytes = C * HW * 4
    bt = B
    while bt > 1 and bt * per_batch_bytes > (2 << 20):
        bt -= 1
    while B % bt:
        bt -= 1
    grid = (B // bt,)

    img_block = pl.BlockSpec((bt, C, HW), lambda i: (i, 0, 0))
    msk_block = pl.BlockSpec((bt, 1, HW), lambda i: (i, 0, 0))

    out_img, out_mask = pl.pallas_call(
        _copypaste_kernel,
        out_shape=(
            jax.ShapeDtypeStruct((B, C, HW), jnp.float32),
            jax.ShapeDtypeStruct((B, 1, HW), jnp.int32),
        ),
        grid=grid,
        in_specs=[img_block, msk_block, img_block, img_block],
        out_specs=(img_block, msk_block),
        compiler_params=pltpu.CompilerParams(
            dimension_semantics=("parallel",)),
    )(cont_l, mask_l, bg_l, noise_l)

    return (out_img.reshape(B, C, bg_height, bg_width),
            out_mask.reshape(B, 1, bg_height, bg_width))


if __name__ == "__main__":
    key = jax.random.PRNGKey(0)
    k_cont, k_mask, k_bg, k_noise = jax.random.split(key, 4)

    B, C = 2, 4
    Hc = Wc = 8        # container / mask spatial size
    Hb = Wb = 16       # background spatial size (Hb*Wb = 256 -> lane-dense)

    container = jax.random.uniform(k_cont, (B, C, Hc, Wc), dtype=jnp.float32)
    mask = (jax.random.uniform(k_mask, (B, 1, Hc, Wc),
                               dtype=jnp.float32) > 0.5).astype(jnp.float32)
    background_image = jax.random.uniform(k_bg, (B, C, Hb, Wb),
                                          dtype=jnp.float32)

    # Deterministic noise-aug tensor (Gaussian), added inside the kernel.
    noise = jax.random.normal(k_noise, (B, C, Hb, Wb), dtype=jnp.float32)

    num_steps = 1
    out_img, out_mask = geometric_copypaste_noise(
        container, mask, background_image, num_steps, noise=noise)
    jax.block_until_ready((out_img, out_mask))

    assert out_img.shape == (B, C, Hb, Wb) and out_img.dtype == jnp.float32
    assert out_mask.shape == (B, 1, Hb, Wb) and out_mask.dtype == jnp.int32

    # Pure-JAX reference check (pad is symmetric here, so the F.pad arg-order
    # quirk is a no-op).
    pad = ((0, 0), (0, 0), (4, 4), (4, 4))
    ref_c = jnp.flip(jnp.pad(container, pad), axis=-1)
    ref_m = jnp.flip(jnp.pad(mask, pad), axis=-1)
    ref_img = ref_c * ref_m + background_image * (1.0 - ref_m) + NOISE_STD * noise
    ref_msk = (ref_m >= 0.5).astype(jnp.int32)
    assert jnp.allclose(out_img, ref_img, atol=1e-6)
    assert jnp.array_equal(out_mask, ref_msk)

    print("KERNEL_OK")
</pallas_src>

<mosaic_0001>
module attributes {stable_mosaic.version = 11 : i64} {
  func.func @_copypaste_kernel(%arg0: i32, %arg1: memref<2x4x256xf32, #tpu.memory_space<vmem>>, %arg2: memref<2x1x256xf32, #tpu.memory_space<vmem>>, %arg3: memref<2x4x256xf32, #tpu.memory_space<vmem>>, %arg4: memref<2x4x256xf32, #tpu.memory_space<vmem>>, %arg5: memref<2x4x256xf32, #tpu.memory_space<vmem>>, %arg6: memref<2x1x256xi32, #tpu.memory_space<vmem>>) attributes {dimension_semantics = [#tpu.dimension_semantics<parallel>], iteration_bounds = array<i64: 1>, scalar_prefetch = 0 : i64, scratch_operands = 0 : i64, tpu.core_type = #tpu.core_type<tc>, window_params = [{transform_indices = @transform_0, window_bounds = array<i64: 2, 4, 256>}, {transform_indices = @transform_1, window_bounds = array<i64: 2, 1, 256>}, {transform_indices = @transform_2, window_bounds = array<i64: 2, 4, 256>}, {transform_indices = @transform_3, window_bounds = array<i64: 2, 4, 256>}, {transform_indices = @transform_4, window_bounds = array<i64: 2, 4, 256>}, {transform_indices = @transform_5, window_bounds = array<i64: 2, 1, 256>}]} {
    %c0 = arith.constant 0 : index
    %c0_0 = arith.constant 0 : index
    %c0_1 = arith.constant 0 : index
    %0 = vector.load %arg1[%c0, %c0_0, %c0_1] : memref<2x4x256xf32, #tpu.memory_space<vmem>>, vector<2x4x256xf32>
    %c0_2 = arith.constant 0 : index
    %c0_3 = arith.constant 0 : index
    %c0_4 = arith.constant 0 : index
    %1 = vector.load %arg2[%c0_2, %c0_3, %c0_4] : memref<2x1x256xf32, #tpu.memory_space<vmem>>, vector<2x1x256xf32>
    %c0_5 = arith.constant 0 : index
    %c0_6 = arith.constant 0 : index
    %c0_7 = arith.constant 0 : index
    %2 = vector.load %arg3[%c0_5, %c0_6, %c0_7] : memref<2x4x256xf32, #tpu.memory_space<vmem>>, vector<2x4x256xf32>
    %3 = arith.subf %0, %2 : vector<2x4x256xf32>
    %4 = vector.broadcast %1 : vector<2x1x256xf32> to vector<2x4x256xf32>
    %5 = arith.mulf %4, %3 : vector<2x4x256xf32>
    %6 = arith.addf %2, %5 : vector<2x4x256xf32>
    %c0_8 = arith.constant 0 : index
    %c0_9 = arith.constant 0 : index
    %c0_10 = arith.constant 0 : index
    %7 = vector.load %arg4[%c0_8, %c0_9, %c0_10] : memref<2x4x256xf32, #tpu.memory_space<vmem>>, vector<2x4x256xf32>
    %cst = arith.constant 1.000000e-01 : f32
    %8 = vector.broadcast %cst : f32 to vector<2x4x256xf32>
    %9 = arith.mulf %8, %7 : vector<2x4x256xf32>
    %10 = arith.addf %6, %9 : vector<2x4x256xf32>
    %c0_11 = arith.constant 0 : index
    %c0_12 = arith.constant 0 : index
    %c0_13 = arith.constant 0 : index
    %11 = vector.load %arg5[%c0_11, %c0_12, %c0_13] : memref<2x4x256xf32, #tpu.memory_space<vmem>>, vector<2x4x256xf32>
    tpu.vector_store %arg5[%c0_11, %c0_12, %c0_13], %10 {strides = array<i32>} : memref<2x4x256xf32, #tpu.memory_space<vmem>>, vector<2x4x256xf32>,
    %cst_14 = arith.constant 5.000000e-01 : f32
    %12 = vector.broadcast %cst_14 : f32 to vector<2x1x256xf32>
    %13 = arith.cmpf oge, %1, %12 : vector<2x1x256xf32>
    %14 = arith.extui %13 : vector<2x1x256xi1> to vector<2x1x256xi32>
    %c0_15 = arith.constant 0 : index
    %c0_16 = arith.constant 0 : index
    %c0_17 = arith.constant 0 : index
    %15 = vector.load %arg6[%c0_15, %c0_16, %c0_17] : memref<2x1x256xi32, #tpu.memory_space<vmem>>, vector<2x1x256xi32>
    tpu.vector_store %arg6[%c0_15, %c0_16, %c0_17], %14 {strides = array<i32>} : memref<2x1x256xi32, #tpu.memory_space<vmem>>, vector<2x1x256xi32>,
    return
  }
  func.func @transform_0(%arg0: i32) -> (i32, i32, i32) {
    %c0_i32 = arith.constant 0 : i32
    %c0_i32_0 = arith.constant 0 : i32
    %c0_i32_1 = arith.constant 0 : i32
    return %arg0, %c0_i32, %c0_i32_0 : i32, i32, i32
  }
  func.func @transform_1(%arg0: i32) -> (i32, i32, i32) {
    %c0_i32 = arith.constant 0 : i32
    %c0_i32_0 = arith.constant 0 : i32
    %c0_i32_1 = arith.constant 0 : i32
    return %arg0, %c0_i32, %c0_i32_0 : i32, i32, i32
  }
  func.func @transform_2(%arg0: i32) -> (i32, i32, i32) {
    %c0_i32 = arith.constant 0 : i32
    %c0_i32_0 = arith.constant 0 : i32
    %c0_i32_1 = arith.constant 0 : i32
    return %arg0, %c0_i32, %c0_i32_0 : i32, i32, i32
  }
  func.func @transform_3(%arg0: i32) -> (i32, i32, i32) {
    %c0_i32 = arith.constant 0 : i32
    %c0_i32_0 = arith.constant 0 : i32
    %c0_i32_1 = arith.constant 0 : i32
    return %arg0, %c0_i32, %c0_i32_0 : i32, i32, i32
  }
  func.func @transform_4(%arg0: i32) -> (i32, i32, i32) {
    %c0_i32 = arith.constant 0 : i32
    %c0_i32_0 = arith.constant 0 : i32
    %c0_i32_1 = arith.constant 0 : i32
    return %arg0, %c0_i32, %c0_i32_0 : i32, i32, i32
  }
  func.func @transform_5(%arg0: i32) -> (i32, i32, i32) {
    %c0_i32 = arith.constant 0 : i32
    %c0_i32_0 = arith.constant 0 : i32
    %c0_i32_1 = arith.constant 0 : i32
    return %arg0, %c0_i32, %c0_i32_0 : i32, i32, i32
  }
}

</mosaic_0001>

<llo_original>
// kernel: tpu_custom_call.1
$region0: #{tpu_custom_call.1}
  #allocation0 [shape = 'u32[]', space=smem, size = 0x4, offset = 0x4, fixed_abs, tag = 'smem constant byte address 0x4 - core index']
  #allocation1 [shape = 'u32[144,128]{1,0:T(1,128)}', space=vmem, size = 0x12000, scoped, tag = 'internal scratch']
  %s0 = inlined_call_operand.hbm [shape: f32[2,4,256], index: 0, kind: input, shape index: {}]
  %s1 = inlined_call_operand.hbm [shape: f32[2,1,256], index: 1, kind: input, shape index: {}]
  %s2 = inlined_call_operand.hbm [shape: f32[2,4,256], index: 2, kind: input, shape index: {}]
  %s3 = inlined_call_operand.hbm [shape: f32[2,4,256], index: 3, kind: input, shape index: {}]
  %s4 = inlined_call_operand.hbm [shape: f32[2,4,256], index: 4, kind: output, shape index: {0}]
  %s5 = inlined_call_operand.hbm [shape: s32[2,1,256], index: 5, kind: output, shape index: {1}]
  %6 = xla_tuple %s4, %s5
  %s7 = sld [smem:[#allocation0]]
  $region50: #{tpu_custom_call.1} parent=0
    _
  %s9 = ssub.s32 1, %s7
  %s10 = scalar_select 0, %s9, %s7
  $region1: #{tpu_custom_call.1} parent=0
    #allocation2 [shape = 'u8[8192]{0}', space=vmem, size = 0x2000, scoped, tag = 'input window, operand 0, single buffered']
    #allocation3 [shape = 's32[1]{0}', space=sflag, size = 0x4, scoped, tag = 'scoped memory for tpu_custom_call.1']
    #allocation4 [shape = 's32[1]{0}', space=sflag, size = 0x4, scoped, tag = 'scoped memory for tpu_custom_call.1']
    #allocation5 [shape = 'u8[2048]{0}', space=vmem, size = 0x800, scoped, tag = 'input window, operand 1, single buffered']
    #allocation6 [shape = 's32[1]{0}', space=sflag, size = 0x4, scoped, tag = 'scoped memory for tpu_custom_call.1']
    #allocation7 [shape = 'u8[8192]{0}', space=vmem, size = 0x2000, scoped, tag = 'input window, operand 2, single buffered']
    #allocation8 [shape = 'u8[8192]{0}', space=vmem, size = 0x2000, scoped, tag = 'input window, operand 3, single buffered']
    #allocation9 [shape = 's32[1]{0}', space=sflag, size = 0x4, scoped, tag = 'scoped memory for tpu_custom_call.1']
    #allocation10 [shape = 'u8[8192]{0}', space=vmem, size = 0x2000, scoped, tag = 'output window, operand 0, single buffered']
    #allocation11 [shape = 'u8[2048]{0}', space=vmem, size = 0x800, scoped, tag = 'output window, operand 1, single buffered']
    #allocation12 [shape = 's32[1]{0}', space=sflag, size = 0x4, scoped, tag = 'scoped memory for tpu_custom_call.1']
    %11 = vsyncpa [#allocation3], 0
    %12 = vsyncpa [#allocation6], 0
    %13 = vsyncpa [#allocation9], 0
    %14 = vsyncpa [#allocation4], 0
    %15 = vsyncpa [#allocation12], 0
    // Predicated region
    $region2: #{tpu_custom_call.1} parent=1 // pred_check
      _
    $region3: #{tpu_custom_call.1} parent=1 // pred_check_branch
      %17 = sbr.rel (0) target = $region5
    $region4: #{tpu_custom_call.1} parent=1 // pred_region
      %s19 = ssub.s32 256, 256
      %20 = vsyncadd [#allocation3], %s19
      %s21 = sshll.u32 [#allocation2], 4
      %s22 = int_to_ptr.vmem [resolvable:$true] %s21
      %27 = dma.hbm_to_vmem [thread:$0]  %s0, 256, %s22, [#allocation3], 128, 128, 8
    $region5: #{tpu_custom_call.1} parent=1 // pred_fallthru
      _
    // Predicated region
    $region6: #{tpu_custom_call.1} parent=1 // pred_check
      _
    $region7: #{tpu_custom_call.1} parent=1 // pred_check_branch
      %29 = sbr.rel (0) target = $region9
    $region8: #{tpu_custom_call.1} parent=1 // pred_region
      %s31 = ssub.s32 64, 64
      %32 = vsyncadd [#allocation6], %s31
      %s33 = sshll.u32 [#allocation5], 4
      %s34 = int_to_ptr.vmem [resolvable:$true] %s33
      %39 = dma.hbm_to_vmem [thread:$0]  %s1, 64, %s34, [#allocation6], 32, 32, 2
    $region9: #{tpu_custom_call.1} parent=1 // pred_fallthru
      _
    // Predicated region
    $region10: #{tpu_custom_call.1} parent=1 // pred_check
      _
    $region11: #{tpu_custom_call.1} parent=1 // pred_check_branch
      %41 = sbr.rel (0) target = $region13
    $region12: #{tpu_custom_call.1} parent=1 // pred_region
      %s43 = ssub.s32 256, 256
      %44 = vsyncadd [#allocation6], %s43
      %s45 = sshll.u32 [#allocation7], 4
      %s46 = int_to_ptr.vmem [resolvable:$true] %s45
      %51 = dma.hbm_to_vmem [thread:$0]  %s2, 256, %s46, [#allocation6], 128, 128, 8
    $region13: #{tpu_custom_call.1} parent=1 // pred_fallthru
      _
    // Predicated region
    $region14: #{tpu_custom_call.1} parent=1 // pred_check
      _
    $region15: #{tpu_custom_call.1} parent=1 // pred_check_branch
      %53 = sbr.rel (0) target = $region17
    $region16: #{tpu_custom_call.1} parent=1 // pred_region
      %s55 = ssub.s32 256, 256
      %56 = vsyncadd [#allocation9], %s55
      %s57 = sshll.u32 [#allocation8], 4
      %s58 = int_to_ptr.vmem [resolvable:$true] %s57
      %63 = dma.hbm_to_vmem [thread:$0]  %s3, 256, %s58, [#allocation9], 128, 128, 8
    $region17: #{tpu_custom_call.1} parent=1 // pred_fallthru
      _
    // Predicated region
    $region18: #{tpu_custom_call.1} parent=1 // pred_check
      _
    $region19: #{tpu_custom_call.1} parent=1 // pred_check_branch
      %65 = sbr.rel (0) target = $region21
    $region20: #{tpu_custom_call.1} parent=1 // pred_region
      %66 = dma.done [#allocation3], 256
    $region21: #{tpu_custom_call.1} parent=1 // pred_fallthru
      _
    // Predicated region
    $region22: #{tpu_custom_call.1} parent=1 // pred_check
      _
    $region23: #{tpu_custom_call.1} parent=1 // pred_check_branch
      %68 = sbr.rel (0) target = $region25
    $region24: #{tpu_custom_call.1} parent=1 // pred_region
      %69 = dma.done [#allocation6], 64
    $region25: #{tpu_custom_call.1} parent=1 // pred_fallthru
      _
    // Predicated region
    $region26: #{tpu_custom_call.1} parent=1 // pred_check
      _
    $region27: #{tpu_custom_call.1} parent=1 // pred_check_branch
      %71 = sbr.rel (0) target = $region29
    $region28: #{tpu_custom_call.1} parent=1 // pred_region
      %72 = dma.done [#allocation6], 256
    $region29: #{tpu_custom_call.1} parent=1 // pred_fallthru
      _
    // Predicated region
    $region30: #{tpu_custom_call.1} parent=1 // pred_check
      _
    $region31: #{tpu_custom_call.1} parent=1 // pred_check_branch
      %74 = sbr.rel (0) target = $region33
    $region32: #{tpu_custom_call.1} parent=1 // pred_region
      %75 = dma.done [#allocation9], 256
    $region33: #{tpu_custom_call.1} parent=1 // pred_fallthru
      _
    %v76 = vld [vmem:[#allocation2] sm:$0xff]
    %v77 = vld [vmem:[#allocation2 + $0x8] sm:$0xff]
    %v78 = vld [vmem:[#allocation5] sm:$0x3]
    %v79 = vld [vmem:[#allocation5 + $0x2] sm:$0x3]
    %v80 = vld [vmem:[#allocation7] sm:$0xff]
    %v81 = vld [vmem:[#allocation7 + $0x8] sm:$0xff]
    %v82 = vsub.f32 %v76, %v80
    %v83 = vsub.f32 %v77, %v81
    %v86 = vlaneseq
    %v87 = vshrl.u32 %v86, 7
    %v88 = vsub.s32 0, %v87
    %v89 = vrot.slane %v78, %v88
    %v90 = vlaneseq
    %v91 = vshrl.u32 %v90, 7
    %v92 = vsub.s32 1, %v91
    %v93 = vrot.slane %v78, %v92
    %v94 = vlaneseq
    %v95 = vshrl.u32 %v94, 7
    %v96 = vsub.s32 0, %v95
    %v97 = vrot.slane %v79, %v96
    %v98 = vlaneseq
    %v99 = vshrl.u32 %v98, 7
    %v100 = vsub.s32 1, %v99
    %v101 = vrot.slane %v79, %v100
    %v108 = vcombine.high %v82, %v82
    %v109 = vcombine.high %v83, %v83
    %v112 = vmul.f32 %v89, %v82
    %v113 = vmul.f32 %v93, %v108
    %v114 = vmul.f32 %v97, %v83
    %v115 = vmul.f32 %v101, %v109
    %v120 = vcombine.low %v112, %v113
    %v121 = vcombine.low %v114, %v115
    %v124 = vadd.f32 %v80, %v120
    %v125 = vadd.f32 %v81, %v121
    %v126 = vld [vmem:[#allocation8] sm:$0xff]
    %v127 = vld [vmem:[#allocation8 + $0x8] sm:$0xff]
    %v128 = vmul.f32 %v126, 0.1
    %v129 = vmul.f32 %v127, 0.1
    %v130 = vadd.f32 %v124, %v128
    %v131 = vadd.f32 %v125, %v129
    %132 = vst [vmem:[#allocation10] sm:$0xff] %v130
    %133 = vst [vmem:[#allocation10 + $0x8] sm:$0xff] %v131
    %vm134 = vcmp.ge.f32.partialorder %v78, 0.5
    %vm135 = vcmp.ge.f32.partialorder %v79, 0.5
    %v136 = vsel %vm134, 1, 0
    %v137 = vsel %vm135, 1, 0
    %v138 = vlaneseq
    %vm139 = vcmp.ge.s32.totalorder %v138, 0
    %vm140 = vcmp.lt.s32.totalorder %v138, 256
    %vm141 = vmand %vm139, %vm140
    %142 = vst.msk [vmem:[#allocation11] sm:$0x3] %vm141, %v136
    %143 = vst.msk [vmem:[#allocation11 + $0x2] sm:$0x3] %vm141, %v137
    // Predicated region
    $region34: #{tpu_custom_call.1} parent=1 // pred_check
      _
    $region35: #{tpu_custom_call.1} parent=1 // pred_check_branch
      %145 = sbr.rel (0) target = $region37
    $region36: #{tpu_custom_call.1} parent=1 // pred_region
      %s147 = ssub.s32 256, 256
      %148 = vsyncadd [#allocation4], %s147
      %s149 = sshll.u32 [#allocation10], 4
      %s150 = int_to_ptr.vmem [resolvable:$true] %s149
      %155 = dma.vmem_to_hbm [thread:$0]  %s150, 256, %s4, [#allocation4], 128, 128, 8
    $region37: #{tpu_custom_call.1} parent=1 // pred_fallthru
      _
    // Predicated region
    $region38: #{tpu_custom_call.1} parent=1 // pred_check
      _
    $region39: #{tpu_custom_call.1} parent=1 // pred_check_branch
      %157 = sbr.rel (0) target = $region41
    $region40: #{tpu_custom_call.1} parent=1 // pred_region
      %s159 = ssub.s32 64, 64
      %160 = vsyncadd [#allocation12], %s159
      %s161 = sshll.u32 [#allocation11], 4
      %s162 = int_to_ptr.vmem [resolvable:$true] %s161
      %167 = dma.vmem_to_hbm [thread:$0]  %s162, 64, %s5, [#allocation12], 32, 32, 2
    $region41: #{tpu_custom_call.1} parent=1 // pred_fallthru
      _
    // Predicated region
    $region42: #{tpu_custom_call.1} parent=1 // pred_check
      _
    $region43: #{tpu_custom_call.1} parent=1 // pred_check_branch
      %169 = sbr.rel (0) target = $region45
    $region44: #{tpu_custom_call.1} parent=1 // pred_region
      %170 = dma.done [#allocation4], 256
    $region45: #{tpu_custom_call.1} parent=1 // pred_fallthru
      _
    // Predicated region
    $region46: #{tpu_custom_call.1} parent=1 // pred_check
      _
    $region47: #{tpu_custom_call.1} parent=1 // pred_check_branch
      %172 = sbr.rel (0) target = $region49
    $region48: #{tpu_custom_call.1} parent=1 // pred_region
      %173 = dma.done [#allocation12], 64
    $region49: #{tpu_custom_call.1} parent=1 // pred_fallthru
      _
    %174 = vsyncpa [#allocation3], 1
    %175 = vsyncpa [#allocation6], 1
    %176 = vsyncpa [#allocation9], 1
    %177 = vsyncpa [#allocation4], 1
    %178 = vsyncpa [#allocation12], 1

</llo_original>
